<compile_context>
chip_gen: v5e
topology: v5e:2x2
jax: 0.10.0
libtpu: 0.0.40
codegen_flags: <defaults>
</compile_context>

<pallas_src>
import functools

import jax
import jax.numpy as jnp
from jax.experimental import pallas as pl
from jax.experimental.pallas import tpu as pltpu


def _round_up(n, m):
    return ((n + m - 1) // m) * m


def autoencoder_kernel(x_ref,       # [TB, Din]   f32
                       w1_ref,      # [Din, H]    f32 or bf16   encoder weight
                       b1_ref,      # [1, H]      f32           encoder bias
                       w2r_ref,     # [1, H]      f32           encoder2 weight (row)
                       b2_ref,      # [1]         f32 (SMEM)    encoder2 bias (scalar)
                       w3r_ref,     # [1, H]      f32           decoder.0 weight (row)
                       b3_ref,      # [1, H]      f32           decoder.0 bias
                       w4_ref,      # [H, Dout]   f32 or bf16   decoder.2 weight
                       b4_ref,      # [1, Dout]   f32           decoder.2 bias
                       feat_ref,    # [TB, H]     out
                       enc_ref,     # [TB, 1]     out (f32)
                       dec_ref):    # [TB, Dout]  out
    compute_dtype = w1_ref.dtype

    # encoder: Linear(Din, H) + Tanh -- MXU matmul, f32 accumulate, f32 tanh.
    # x is cast in-kernel (free VPU slots under a DMA-bound schedule) instead of in the wrapper.
    pre1 = jnp.dot(x_ref[...].astype(compute_dtype), w1_ref[...],
                   preferred_element_type=jnp.float32) + b1_ref[...]
    feature = jnp.tanh(pre1)                                             # [TB, H] f32
    feat_ref[...] = feature.astype(feat_ref.dtype)

    # encoder2: Linear(H, 1) -- N=1 matmul; keep it off the MXU (VPU multiply + lane reduce).
    encoded = jnp.sum(feature * w2r_ref[...], axis=-1, keepdims=True) + b2_ref[0]   # [TB, 1]
    enc_ref[...] = encoded

    # decoder.0 + Tanh: Linear(1, H) -- K=1 rank-1 matmul; broadcast-multiply on the VPU.
    h = jnp.tanh(encoded * w3r_ref[...] + b3_ref[...])                   # [TB, H] f32

    # decoder.2: Linear(H, Dout) -- MXU matmul, f32 accumulate.
    dec = jnp.dot(h.astype(w4_ref.dtype), w4_ref[...],
                  preferred_element_type=jnp.float32) + b4_ref[...]
    dec_ref[...] = dec.astype(dec_ref.dtype)


def autoencoder_forward(x, params, *, block_b=None, max_block_b=1024,
                        compute_dtype=jnp.float32, out_dtype=jnp.float32):
    """x: [B, Din] f32. params stored pre-transposed as [in, out] / [1, out]."""
    w1, b1, w2, b2, w3, b3, w4, b4 = params
    B, Din = x.shape
    H = w1.shape[1]
    Dout = w4.shape[1]

    # Batch tile: big enough to amortize the ~0.35us per-grid-step overhead, but keep >=2
    # grid steps so v7x's two TensorCores can both be used via the "parallel" batch axis.
    if block_b is None:
        block_b = min(max_block_b, _round_up(pl.cdiv(B, 2), 8))
    block_b = max(8, _round_up(block_b, 8))
    block_b = min(block_b, _round_up(B, 8))
    nb = pl.cdiv(B, block_b)            # ragged last tile is fine: rows are independent

    # Weight prep (tiny, resident): only the two real matmul weights get the compute dtype.
    w1_c = w1.astype(compute_dtype)
    w4_c = w4.astype(compute_dtype)
    w2r = w2.reshape(1, H)              # encoder2 weight as a [1, H] row
    b2_s = b2.reshape((1,)).astype(jnp.float32)   # scalar bias -> SMEM
    w3r = w3.reshape(1, H)              # decoder.0 weight is already [1, H]

    const = lambda i: (0, 0)            # weights/biases: resident, DMA'd once
    grid_spec = pltpu.PrefetchScalarGridSpec(
        num_scalar_prefetch=0,
        grid=(nb,),
        in_specs=[
            pl.BlockSpec((block_b, Din), lambda i: (i, 0)),     # x tile (no Din padding)
            pl.BlockSpec((Din, H), const),                      # w1
            pl.BlockSpec((1, H), const),                        # b1
            pl.BlockSpec((1, H), const),                        # w2 row
            pl.BlockSpec(memory_space=pltpu.MemorySpace.SMEM),  # b2 scalar
            pl.BlockSpec((1, H), const),                        # w3 row
            pl.BlockSpec((1, H), const),                        # b3
            pl.BlockSpec((H, Dout), const),                     # w4
            pl.BlockSpec((1, Dout), const),                     # b4
        ],
        out_specs=(
            pl.BlockSpec((block_b, H), lambda i: (i, 0)),       # feature  [B, H]
            pl.BlockSpec((block_b, 1), lambda i: (i, 0)),       # encoded  [B, 1]
            pl.BlockSpec((block_b, Dout), lambda i: (i, 0)),    # decoded  [B, Dout]
        ),
    )

    feature, encoded, decoded = pl.pallas_call(
        autoencoder_kernel,
        out_shape=(
            jax.ShapeDtypeStruct((B, H), out_dtype),
            jax.ShapeDtypeStruct((B, 1), jnp.float32),
            jax.ShapeDtypeStruct((B, Dout), out_dtype),
        ),
        grid_spec=grid_spec,
        compiler_params=pltpu.CompilerParams(
            dimension_semantics=("parallel",),   # batch grid: shard steps across TCs
            # no vmem_limit override: footprint is << default scoped VMEM on v5e/v6e/v7x
        ),
    )(x, w1_c, b1, w2r, b2_s, w3r, b3, w4_c, b4)

    return feature, encoded, decoded


def init_params(key, input_size, hidden_size, output_size):
    """Deterministic init mimicking PyTorch's U(-1/sqrt(fan_in), 1/sqrt(fan_in)).
    Weights stored transposed ([in, out]); biases as [1, out]."""
    ks = jax.random.split(key, 8)

    def lin(kw, kb, fan_in, fan_out):
        bound = 1.0 / jnp.sqrt(fan_in)
        w = jax.random.uniform(kw, (fan_in, fan_out), jnp.float32, -bound, bound)
        b = jax.random.uniform(kb, (1, fan_out), jnp.float32, -bound, bound)
        return w, b

    w1, b1 = lin(ks[0], ks[1], input_size, hidden_size)   # encoder
    w2, b2 = lin(ks[2], ks[3], hidden_size, 1)            # encoder2
    w3, b3 = lin(ks[4], ks[5], 1, hidden_size)            # decoder.0
    w4, b4 = lin(ks[6], ks[7], hidden_size, output_size)  # decoder.2
    return (w1, b1, w2, b2, w3, b3, w4, b4)


def reference_forward(x, params):
    w1, b1, w2, b2, w3, b3, w4, b4 = params
    feature = jnp.tanh(x @ w1 + b1)
    encoded = feature @ w2 + b2
    decoded = jnp.tanh(encoded @ w3 + b3) @ w4 + b4
    return feature, encoded, decoded


if __name__ == "__main__":
    INPUT, HIDDEN, OUTPUT = 16, 32, 16

    key = jax.random.PRNGKey(0)
    kx, kp = jax.random.split(key)
    params = init_params(kp, INPUT, HIDDEN, OUTPUT)

    fwd_f32 = jax.jit(autoencoder_forward)

    # f32 path; B=256 (even grid) and B=250 (ragged last batch tile, no padding) must match.
    for B in (256, 250):
        x = jax.random.normal(jax.random.fold_in(kx, B), (B, INPUT), jnp.float32)
        ref_feature, ref_encoded, ref_decoded = reference_forward(x, params)

        feature, encoded, decoded = jax.block_until_ready(fwd_f32(x, params))
        assert feature.shape == (B, HIDDEN) and feature.dtype == jnp.float32
        assert encoded.shape == (B, 1)
        assert decoded.shape == (B, OUTPUT)
        assert jnp.allclose(feature, ref_feature, atol=1e-5, rtol=1e-5)
        assert jnp.allclose(encoded, ref_encoded, atol=1e-5, rtol=1e-5)
        assert jnp.allclose(decoded, ref_decoded, atol=1e-5, rtol=1e-5)

    # bf16 matmul path: only resident weights (w1, w4) pre-cast; x cast in-kernel.
    B = 256
    x = jax.random.normal(jax.random.fold_in(kx, B), (B, INPUT), jnp.float32)
    ref_feature, ref_encoded, ref_decoded = reference_forward(x, params)
    fwd_bf16 = jax.jit(functools.partial(autoencoder_forward, compute_dtype=jnp.bfloat16))
    f_b, e_b, d_b = jax.block_until_ready(fwd_bf16(x, params))
    assert jnp.allclose(f_b, ref_feature, atol=5e-2, rtol=5e-2)
    assert jnp.allclose(e_b, ref_encoded, atol=5e-2, rtol=5e-2)
    assert jnp.allclose(d_b, ref_decoded, atol=5e-2, rtol=5e-2)

    print("KERNEL_OK")
</pallas_src>

<mosaic_0001>
module attributes {stable_mosaic.version = 11 : i64} {
  func.func @autoencoder_kernel(%arg0: i32, %arg1: memref<128x16xf32, #tpu.memory_space<vmem>>, %arg2: memref<16x32xf32, #tpu.memory_space<vmem>>, %arg3: memref<1x32xf32, #tpu.memory_space<vmem>>, %arg4: memref<1x32xf32, #tpu.memory_space<vmem>>, %arg5: memref<1xf32, #tpu.memory_space<smem>>, %arg6: memref<1x32xf32, #tpu.memory_space<vmem>>, %arg7: memref<1x32xf32, #tpu.memory_space<vmem>>, %arg8: memref<32x16xf32, #tpu.memory_space<vmem>>, %arg9: memref<1x16xf32, #tpu.memory_space<vmem>>, %arg10: memref<128x32xf32, #tpu.memory_space<vmem>>, %arg11: memref<128x1xf32, #tpu.memory_space<vmem>>, %arg12: memref<128x16xf32, #tpu.memory_space<vmem>>) attributes {dimension_semantics = [#tpu.dimension_semantics<parallel>], iteration_bounds = array<i64: 2>, scalar_prefetch = 0 : i64, scratch_operands = 0 : i64, tpu.core_type = #tpu.core_type<tc>, window_params = [{transform_indices = @transform_0, window_bounds = array<i64: 128, 16>}, {pipeline_mode = #tpu.pipeline_mode<synchronous>, transform_indices = @transform_1, window_bounds = array<i64: 16, 32>}, {pipeline_mode = #tpu.pipeline_mode<synchronous>, transform_indices = @transform_2, window_bounds = array<i64: 1, 32>}, {pipeline_mode = #tpu.pipeline_mode<synchronous>, transform_indices = @transform_3, window_bounds = array<i64: 1, 32>}, {transform_indices = @transform_4, window_bounds = array<i64: 1>}, {pipeline_mode = #tpu.pipeline_mode<synchronous>, transform_indices = @transform_5, window_bounds = array<i64: 1, 32>}, {pipeline_mode = #tpu.pipeline_mode<synchronous>, transform_indices = @transform_6, window_bounds = array<i64: 1, 32>}, {pipeline_mode = #tpu.pipeline_mode<synchronous>, transform_indices = @transform_7, window_bounds = array<i64: 32, 16>}, {pipeline_mode = #tpu.pipeline_mode<synchronous>, transform_indices = @transform_8, window_bounds = array<i64: 1, 16>}, {transform_indices = @transform_9, window_bounds = array<i64: 128, 32>}, {transform_indices = @transform_10, window_bounds = array<i64: 128, 1>}, {transform_indices = @transform_11, window_bounds = array<i64: 128, 16>}]} {
    %c0 = arith.constant 0 : index
    %c0_0 = arith.constant 0 : index
    %0 = vector.load %arg1[%c0, %c0_0] : memref<128x16xf32, #tpu.memory_space<vmem>>, vector<128x16xf32>
    %c0_1 = arith.constant 0 : index
    %c0_2 = arith.constant 0 : index
    %1 = vector.load %arg2[%c0_1, %c0_2] : memref<16x32xf32, #tpu.memory_space<vmem>>, vector<16x32xf32>
    %cst = arith.constant dense<0.000000e+00> : vector<128x32xf32>
    %2 = tpu.matmul %0, %1, %cst {dimension_numbers = #tpu.dot_dimension_numbers<[1], [0], [0], [1], [0, 0, 1, 1], [], []>} : vector<128x16xf32>, vector<16x32xf32>, vector<128x32xf32> -> vector<128x32xf32>
    %c0_3 = arith.constant 0 : index
    %c0_4 = arith.constant 0 : index
    %3 = vector.load %arg3[%c0_3, %c0_4] : memref<1x32xf32, #tpu.memory_space<vmem>>, vector<1x32xf32>
    %4 = vector.broadcast %3 : vector<1x32xf32> to vector<128x32xf32>
    %5 = arith.addf %2, %4 : vector<128x32xf32>
    %6 = math.tanh %5 : vector<128x32xf32>
    %c0_5 = arith.constant 0 : index
    %c0_6 = arith.constant 0 : index
    %7 = vector.load %arg10[%c0_5, %c0_6] : memref<128x32xf32, #tpu.memory_space<vmem>>, vector<128x32xf32>
    tpu.vector_store %arg10[%c0_5, %c0_6], %6 {strides = array<i32>} : memref<128x32xf32, #tpu.memory_space<vmem>>, vector<128x32xf32>,
    %c0_7 = arith.constant 0 : index
    %c0_8 = arith.constant 0 : index
    %8 = vector.load %arg4[%c0_7, %c0_8] : memref<1x32xf32, #tpu.memory_space<vmem>>, vector<1x32xf32>
    %9 = vector.broadcast %8 : vector<1x32xf32> to vector<128x32xf32>
    %10 = arith.mulf %6, %9 : vector<128x32xf32>
    %cst_9 = arith.constant dense<0.000000e+00> : vector<128xf32>
    %11 = vector.multi_reduction <add>, %10, %cst_9 [1] : vector<128x32xf32> to vector<128xf32>
    %12 = vector.shape_cast %11 : vector<128xf32> to vector<128x1xf32>
    %c0_10 = arith.constant 0 : index
    %13 = memref.load %arg5[%c0_10] : memref<1xf32, #tpu.memory_space<smem>>
    %14 = vector.broadcast %13 : f32 to vector<128x1xf32>
    %15 = arith.addf %12, %14 : vector<128x1xf32>
    %c0_11 = arith.constant 0 : index
    %c0_12 = arith.constant 0 : index
    %16 = vector.load %arg11[%c0_11, %c0_12] : memref<128x1xf32, #tpu.memory_space<vmem>>, vector<128x1xf32>
    tpu.vector_store %arg11[%c0_11, %c0_12], %15 {strides = array<i32>} : memref<128x1xf32, #tpu.memory_space<vmem>>, vector<128x1xf32>,
    %c0_13 = arith.constant 0 : index
    %c0_14 = arith.constant 0 : index
    %17 = vector.load %arg6[%c0_13, %c0_14] : memref<1x32xf32, #tpu.memory_space<vmem>>, vector<1x32xf32>
    %18 = vector.broadcast %15 : vector<128x1xf32> to vector<128x32xf32>
    %19 = vector.broadcast %17 : vector<1x32xf32> to vector<128x32xf32>
    %20 = arith.mulf %18, %19 : vector<128x32xf32>
    %c0_15 = arith.constant 0 : index
    %c0_16 = arith.constant 0 : index
    %21 = vector.load %arg7[%c0_15, %c0_16] : memref<1x32xf32, #tpu.memory_space<vmem>>, vector<1x32xf32>
    %22 = vector.broadcast %21 : vector<1x32xf32> to vector<128x32xf32>
    %23 = arith.addf %20, %22 : vector<128x32xf32>
    %24 = math.tanh %23 : vector<128x32xf32>
    %c0_17 = arith.constant 0 : index
    %c0_18 = arith.constant 0 : index
    %25 = vector.load %arg8[%c0_17, %c0_18] : memref<32x16xf32, #tpu.memory_space<vmem>>, vector<32x16xf32>
    %cst_19 = arith.constant dense<0.000000e+00> : vector<128x16xf32>
    %26 = tpu.matmul %24, %25, %cst_19 {dimension_numbers = #tpu.dot_dimension_numbers<[1], [0], [0], [1], [0, 0, 1, 1], [], []>} : vector<128x32xf32>, vector<32x16xf32>, vector<128x16xf32> -> vector<128x16xf32>
    %c0_20 = arith.constant 0 : index
    %c0_21 = arith.constant 0 : index
    %27 = vector.load %arg9[%c0_20, %c0_21] : memref<1x16xf32, #tpu.memory_space<vmem>>, vector<1x16xf32>
    %28 = vector.broadcast %27 : vector<1x16xf32> to vector<128x16xf32>
    %29 = arith.addf %26, %28 : vector<128x16xf32>
    %c0_22 = arith.constant 0 : index
    %c0_23 = arith.constant 0 : index
    %30 = vector.load %arg12[%c0_22, %c0_23] : memref<128x16xf32, #tpu.memory_space<vmem>>, vector<128x16xf32>
    tpu.vector_store %arg12[%c0_22, %c0_23], %29 {strides = array<i32>} : memref<128x16xf32, #tpu.memory_space<vmem>>, vector<128x16xf32>,
    return
  }
  func.func @transform_0(%arg0: i32) -> (i32, i32) {
    %c0_i32 = arith.constant 0 : i32
    %c0_i32_0 = arith.constant 0 : i32
    return %arg0, %c0_i32 : i32, i32
  }
  func.func @transform_1(%arg0: i32) -> (i32, i32) {
    %c0_i32 = arith.constant 0 : i32
    %c0_i32_0 = arith.constant 0 : i32
    %c0_i32_1 = arith.constant 0 : i32
    return %c0_i32, %c0_i32_0 : i32, i32
  }
  func.func @transform_2(%arg0: i32) -> (i32, i32) {
    %c0_i32 = arith.constant 0 : i32
    %c0_i32_0 = arith.constant 0 : i32
    %c0_i32_1 = arith.constant 0 : i32
    return %c0_i32, %c0_i32_0 : i32, i32
  }
  func.func @transform_3(%arg0: i32) -> (i32, i32) {
    %c0_i32 = arith.constant 0 : i32
    %c0_i32_0 = arith.constant 0 : i32
    %c0_i32_1 = arith.constant 0 : i32
    return %c0_i32, %c0_i32_0 : i32, i32
  }
  func.func @transform_4(%arg0: i32) -> i32 {
    %c0_i32 = arith.constant 0 : i32
    %c0_i32_0 = arith.constant 0 : i32
    return %c0_i32 : i32
  }
  func.func @transform_5(%arg0: i32) -> (i32, i32) {
    %c0_i32 = arith.constant 0 : i32
    %c0_i32_0 = arith.constant 0 : i32
    %c0_i32_1 = arith.constant 0 : i32
    return %c0_i32, %c0_i32_0 : i32, i32
  }
  func.func @transform_6(%arg0: i32) -> (i32, i32) {
    %c0_i32 = arith.constant 0 : i32
    %c0_i32_0 = arith.constant 0 : i32
    %c0_i32_1 = arith.constant 0 : i32
    return %c0_i32, %c0_i32_0 : i32, i32
  }
  func.func @transform_7(%arg0: i32) -> (i32, i32) {
    %c0_i32 = arith.constant 0 : i32
    %c0_i32_0 = arith.constant 0 : i32
    %c0_i32_1 = arith.constant 0 : i32
    return %c0_i32, %c0_i32_0 : i32, i32
  }
  func.func @transform_8(%arg0: i32) -> (i32, i32) {
    %c0_i32 = arith.constant 0 : i32
    %c0_i32_0 = arith.constant 0 : i32
    %c0_i32_1 = arith.constant 0 : i32
    return %c0_i32, %c0_i32_0 : i32, i32
  }
  func.func @transform_9(%arg0: i32) -> (i32, i32) {
    %c0_i32 = arith.constant 0 : i32
    %c0_i32_0 = arith.constant 0 : i32
    return %arg0, %c0_i32 : i32, i32
  }
  func.func @transform_10(%arg0: i32) -> (i32, i32) {
    %c0_i32 = arith.constant 0 : i32
    %c0_i32_0 = arith.constant 0 : i32
    return %arg0, %c0_i32 : i32, i32
  }
  func.func @transform_11(%arg0: i32) -> (i32, i32) {
    %c0_i32 = arith.constant 0 : i32
    %c0_i32_0 = arith.constant 0 : i32
    return %arg0, %c0_i32 : i32, i32
  }
}

</mosaic_0001>

<llo_original>
// kernel: autoencoder_forward.1
$region0: #{autoencoder_forward.1}
  #allocation0 [shape = 'u32[]', space=smem, size = 0x4, offset = 0x4, fixed_abs, tag = 'smem constant byte address 0x4 - core index']
  #allocation1 [shape = 'u32[72,128]{1,0:T(1,128)}', space=vmem, size = 0x9000, scoped, tag = 'internal scratch']
  #allocation2 [shape = 'f32[1]{0:T(128)S(6)}', space=smem, size = 0x200, scoped, tag = 'scoped memory for autoencoder_forward.1']
  %s0 = inlined_call_operand.vmem [shape: f32[256,16], index: 0, kind: input, shape index: {}]
  %s1 = inlined_call_operand.vmem [shape: f32[16,32], index: 1, kind: input, shape index: {}]
  %s2 = inlined_call_operand.vmem [shape: f32[1,32], index: 2, kind: input, shape index: {}]
  %s3 = inlined_call_operand.vmem [shape: f32[1,32], index: 3, kind: input, shape index: {}]
  %s4 = inlined_call_operand.<no memory space> [shape: f32[1], index: 4, kind: input, shape index: {}]
  %s5 = inlined_call_operand.vmem [shape: f32[1,32], index: 5, kind: input, shape index: {}]
  %s6 = inlined_call_operand.vmem [shape: f32[1,32], index: 6, kind: input, shape index: {}]
  %s7 = inlined_call_operand.vmem [shape: f32[32,16], index: 7, kind: input, shape index: {}]
  %s8 = inlined_call_operand.vmem [shape: f32[1,16], index: 8, kind: input, shape index: {}]
  %s9 = inlined_call_operand.vmem [shape: f32[256,32], index: 9, kind: output, shape index: {0}]
  %s10 = inlined_call_operand.vmem [shape: f32[256,1], index: 10, kind: output, shape index: {1}]
  %s11 = inlined_call_operand.vmem [shape: f32[256,16], index: 11, kind: output, shape index: {2}]
  %12 = xla_tuple %s9, %s10, %s11
  %s13 = sld [smem:[#allocation0]]
  $region85: #{autoencoder_forward.1} parent=0
    _
  %s15 = ssub.s32 1, %s13
  %s16 = scalar_select 0, %s15, %s13
  %17 = sst [smem:[#allocation2]] %s4
  loop: start=0, step=1, limit=4
  $region2: #{autoencoder_forward.1} parent=0 // loop_pre_header
    _
  $region3: #{autoencoder_forward.1} parent=0 // loop_header
    %s19 = sphi 0, %s23
    %p20 = scmp.ge.s32.totalorder %s19, 4
    %s29 = sphi 0, %s31
    %s32 = sphi 0, %s29
    %s33 = sphi 0, %s32
    %s49 = sphi 0, %s33
    %s53 = sphi 0, %s53
    %s55 = sphi 0, %s53
    %s56 = sphi 0, %s55
    %s70 = sphi 0, %s56
    %s74 = sphi 0, %s74
    %s76 = sphi 0, %s74
    %s77 = sphi 0, %s76
    %s91 = sphi 0, %s77
    %s95 = sphi 0, %s95
    %s97 = sphi 0, %s95
    %s98 = sphi 0, %s97
    %s112 = sphi 0, %s98
    %s116 = sphi 0, %s116
    %s118 = sphi 0, %s116
    %s119 = sphi 0, %s118
    %s133 = sphi 0, %s119
    %s137 = sphi 0, %s137
    %s139 = sphi 0, %s137
    %s140 = sphi 0, %s139
    %s154 = sphi 0, %s140
    %s158 = sphi 0, %s158
    %s160 = sphi 0, %s158
    %s161 = sphi 0, %s160
    %s175 = sphi 0, %s161
    %s179 = sphi 0, %s179
    %s181 = sphi 0, %s179
    %s182 = sphi 0, %s181
    %s196 = sphi 0, %s182
    %s200 = sphi 0, %s200
    %s202 = sphi 0, %s200
    %s203 = sphi 0, %s202
    %s217 = sphi 0, %s203
    %s223 = sphi 0, %s225
    %s226 = sphi 0, %s223
    %s227 = sphi 0, %s226
    %s243 = sphi 0, %s227
    %s249 = sphi 0, %s251
    %s252 = sphi 0, %s249
    %s253 = sphi 0, %s252
    %s269 = sphi 0, %s253
    %s275 = sphi 0, %s277
    %s278 = sphi 0, %s275
    %s279 = sphi 0, %s278
    %s295 = sphi 0, %s279
  $region4: #{autoencoder_forward.1} parent=0 // loop_header_branch
    %22 = sbr.rel (%p20) target = $region8
  $region5: #{autoencoder_forward.1} parent=0 // loop_body
    %s24 = ssub.s32 %s19, 1
    %s25 = ssub.s32 %s19, 2
    %s26 = sadd.s32 %s19, 1
    %s27 = ssub.s32 %s19, %s26
    %p28 = scmp.eq.s32.totalorder %s27, 0
    %s30 = sadd.s32 %s29, 1
    %s31 = scalar_select %p28, %s29, %s30
    %p34 = pneg %p28
    %p35 = scmp.eq.s32.totalorder %s19, 1
    %p36 = por %p34, %p35
    %p37 = scmp.ne.s32.totalorder %s29, %s32
    %p38 = scmp.eq.s32.totalorder %s19, 0
    %p39 = por %p37, %p38
    %p40 = scmp.ne.s32.totalorder %s29, %s32
    %p41 = scmp.eq.s32.totalorder %s24, 1
    %p42 = por %p40, %p41
    %p43 = scmp.ne.s32.totalorder %s32, %s33
    %p44 = scmp.eq.s32.totalorder %s24, 0
    %p45 = por %p43, %p44
    %p46 = scmp.ne.s32.totalorder %s32, %s33
    %p47 = scmp.eq.s32.totalorder %s25, 1
    %p48 = por %p46, %p47
    %p50 = scmp.ne.s32.totalorder %s33, %s49
    %p51 = scmp.eq.s32.totalorder %s25, 0
    %p52 = por %p50, %p51
    %s54 = sadd.s32 %s53, 1
    %p57 = scmp.eq.s32.totalorder %s19, 1
    %p58 = scmp.ne.s32.totalorder %s53, %s55
    %p59 = scmp.eq.s32.totalorder %s19, 0
    %p60 = por %p58, %p59
    %p61 = scmp.ne.s32.totalorder %s53, %s55
    %p62 = scmp.eq.s32.totalorder %s24, 1
    %p63 = por %p61, %p62
    %p64 = scmp.ne.s32.totalorder %s55, %s56
    %p65 = scmp.eq.s32.totalorder %s24, 0
    %p66 = por %p64, %p65
    %p67 = scmp.ne.s32.totalorder %s55, %s56
    %p68 = scmp.eq.s32.totalorder %s25, 1
    %p69 = por %p67, %p68
    %p71 = scmp.ne.s32.totalorder %s56, %s70
    %p72 = scmp.eq.s32.totalorder %s25, 0
    %p73 = por %p71, %p72
    %s75 = sadd.s32 %s74, 1
    %p78 = scmp.eq.s32.totalorder %s19, 1
    %p79 = scmp.ne.s32.totalorder %s74, %s76
    %p80 = scmp.eq.s32.totalorder %s19, 0
    %p81 = por %p79, %p80
    %p82 = scmp.ne.s32.totalorder %s74, %s76
    %p83 = scmp.eq.s32.totalorder %s24, 1
    %p84 = por %p82, %p83
    %p85 = scmp.ne.s32.totalorder %s76, %s77
    %p86 = scmp.eq.s32.totalorder %s24, 0
    %p87 = por %p85, %p86
    %p88 = scmp.ne.s32.totalorder %s76, %s77
    %p89 = scmp.eq.s32.totalorder %s25, 1
    %p90 = por %p88, %p89
    %p92 = scmp.ne.s32.totalorder %s77, %s91
    %p93 = scmp.eq.s32.totalorder %s25, 0
    %p94 = por %p92, %p93
    %s96 = sadd.s32 %s95, 1
    %p99 = scmp.eq.s32.totalorder %s19, 1
    %p100 = scmp.ne.s32.totalorder %s95, %s97
    %p101 = scmp.eq.s32.totalorder %s19, 0
    %p102 = por %p100, %p101
    %p103 = scmp.ne.s32.totalorder %s95, %s97
    %p104 = scmp.eq.s32.totalorder %s24, 1
    %p105 = por %p103, %p104
    %p106 = scmp.ne.s32.totalorder %s97, %s98
    %p107 = scmp.eq.s32.totalorder %s24, 0
    %p108 = por %p106, %p107
    %p109 = scmp.ne.s32.totalorder %s97, %s98
    %p110 = scmp.eq.s32.totalorder %s25, 1
    %p111 = por %p109, %p110
    %p113 = scmp.ne.s32.totalorder %s98, %s112
    %p114 = scmp.eq.s32.totalorder %s25, 0
    %p115 = por %p113, %p114
    %s117 = sadd.s32 %s116, 1
    %p120 = scmp.eq.s32.totalorder %s19, 1
    %p121 = scmp.ne.s32.totalorder %s116, %s118
    %p122 = scmp.eq.s32.totalorder %s19, 0
    %p123 = por %p121, %p122
    %p124 = scmp.ne.s32.totalorder %s116, %s118
    %p125 = scmp.eq.s32.totalorder %s24, 1
    %p126 = por %p124, %p125
    %p127 = scmp.ne.s32.totalorder %s118, %s119
    %p128 = scmp.eq.s32.totalorder %s24, 0
    %p129 = por %p127, %p128
    %p130 = scmp.ne.s32.totalorder %s118, %s119
    %p131 = scmp.eq.s32.totalorder %s25, 1
    %p132 = por %p130, %p131
    %p134 = scmp.ne.s32.totalorder %s119, %s133
    %p135 = scmp.eq.s32.totalorder %s25, 0
    %p136 = por %p134, %p135
    %s138 = sadd.s32 %s137, 1
    %p141 = scmp.eq.s32.totalorder %s19, 1
    %p142 = scmp.ne.s32.totalorder %s137, %s139
    %p143 = scmp.eq.s32.totalorder %s19, 0
    %p144 = por %p142, %p143
    %p145 = scmp.ne.s32.totalorder %s137, %s139
    %p146 = scmp.eq.s32.totalorder %s24, 1
    %p147 = por %p145, %p146
    %p148 = scmp.ne.s32.totalorder %s139, %s140
    %p149 = scmp.eq.s32.totalorder %s24, 0
    %p150 = por %p148, %p149
    %p151 = scmp.ne.s32.totalorder %s139, %s140
    %p152 = scmp.eq.s32.totalorder %s25, 1
    %p153 = por %p151, %p152
    %p155 = scmp.ne.s32.totalorder %s140, %s154
    %p156 = scmp.eq.s32.totalorder %s25, 0
    %p157 = por %p155, %p156
    %s159 = sadd.s32 %s158, 1
    %p162 = scmp.eq.s32.totalorder %s19, 1
    %p163 = scmp.ne.s32.totalorder %s158, %s160
    %p164 = scmp.eq.s32.totalorder %s19, 0
    %p165 = por %p163, %p164
    %p166 = scmp.ne.s32.totalorder %s158, %s160
    %p167 = scmp.eq.s32.totalorder %s24, 1
    %p168 = por %p166, %p167
    %p169 = scmp.ne.s32.totalorder %s160, %s161
    %p170 = scmp.eq.s32.totalorder %s24, 0
    %p171 = por %p169, %p170
    %p172 = scmp.ne.s32.totalorder %s160, %s161
    %p173 = scmp.eq.s32.totalorder %s25, 1
    %p174 = por %p172, %p173
    %p176 = scmp.ne.s32.totalorder %s161, %s175
    %p177 = scmp.eq.s32.totalorder %s25, 0
    %p178 = por %p176, %p177
    %s180 = sadd.s32 %s179, 1
    %p183 = scmp.eq.s32.totalorder %s19, 1
    %p184 = scmp.ne.s32.totalorder %s179, %s181
    %p185 = scmp.eq.s32.totalorder %s19, 0
    %p186 = por %p184, %p185
    %p187 = scmp.ne.s32.totalorder %s179, %s181
    %p188 = scmp.eq.s32.totalorder %s24, 1
    %p189 = por %p187, %p188
    %p190 = scmp.ne.s32.totalorder %s181, %s182
    %p191 = scmp.eq.s32.totalorder %s24, 0
    %p192 = por %p190, %p191
    %p193 = scmp.ne.s32.totalorder %s181, %s182
    %p194 = scmp.eq.s32.totalorder %s25, 1
    %p195 = por %p193, %p194
    %p197 = scmp.ne.s32.totalorder %s182, %s196
    %p198 = scmp.eq.s32.totalorder %s25, 0
    %p199 = por %p197, %p198
    %s201 = sadd.s32 %s200, 1
    %p204 = scmp.eq.s32.totalorder %s19, 1
    %p205 = scmp.ne.s32.totalorder %s200, %s202
    %p206 = scmp.eq.s32.totalorder %s19, 0
    %p207 = por %p205, %p206
    %p208 = scmp.ne.s32.totalorder %s200, %s202
    %p209 = scmp.eq.s32.totalorder %s24, 1
    %p210 = por %p208, %p209
    %p211 = scmp.ne.s32.totalorder %s202, %s203
    %p212 = scmp.eq.s32.totalorder %s24, 0
    %p213 = por %p211, %p212
    %p214 = scmp.ne.s32.totalorder %s202, %s203
    %p215 = scmp.eq.s32.totalorder %s25, 1
    %p216 = por %p214, %p215
    %p218 = scmp.ne.s32.totalorder %s203, %s217
    %p219 = scmp.eq.s32.totalorder %s25, 0
    %p220 = por %p218, %p219
    %s221 = ssub.s32 %s19, %s26
    %p222 = scmp.eq.s32.totalorder %s221, 0
    %s224 = sadd.s32 %s223, 1
    %s225 = scalar_select %p222, %s223, %s224
    %p228 = pneg %p222
    %p229 = scmp.eq.s32.totalorder %s19, 1
    %p230 = por %p228, %p229
    %p231 = scmp.ne.s32.totalorder %s223, %s226
    %p232 = scmp.eq.s32.totalorder %s19, 0
    %p233 = por %p231, %p232
    %p234 = scmp.ne.s32.totalorder %s223, %s226
    %p235 = scmp.eq.s32.totalorder %s24, 1
    %p236 = por %p234, %p235
    %p237 = scmp.ne.s32.totalorder %s226, %s227
    %p238 = scmp.eq.s32.totalorder %s24, 0
    %p239 = por %p237, %p238
    %p240 = scmp.ne.s32.totalorder %s226, %s227
    %p241 = scmp.eq.s32.totalorder %s25, 1
    %p242 = por %p240, %p241
    %p244 = scmp.ne.s32.totalorder %s227, %s243
    %p245 = scmp.eq.s32.totalorder %s25, 0
    %p246 = por %p244, %p245
    %s247 = ssub.s32 %s19, %s26
    %p248 = scmp.eq.s32.totalorder %s247, 0
    %s250 = sadd.s32 %s249, 1
    %s251 = scalar_select %p248, %s249, %s250
    %p254 = pneg %p248
    %p255 = scmp.eq.s32.totalorder %s19, 1
    %p256 = por %p254, %p255
    %p257 = scmp.ne.s32.totalorder %s249, %s252
    %p258 = scmp.eq.s32.totalorder %s19, 0
    %p259 = por %p257, %p258
    %p260 = scmp.ne.s32.totalorder %s249, %s252
    %p261 = scmp.eq.s32.totalorder %s24, 1
    %p262 = por %p260, %p261
    %p263 = scmp.ne.s32.totalorder %s252, %s253
    %p264 = scmp.eq.s32.totalorder %s24, 0
    %p265 = por %p263, %p264
    %p266 = scmp.ne.s32.totalorder %s252, %s253
    %p267 = scmp.eq.s32.totalorder %s25, 1
    %p268 = por %p266, %p267
    %p270 = scmp.ne.s32.totalorder %s253, %s269
    %p271 = scmp.eq.s32.totalorder %s25, 0
    %p272 = por %p270, %p271
    %s273 = ssub.s32 %s19, %s26
    %p274 = scmp.eq.s32.totalorder %s273, 0
    %s276 = sadd.s32 %s275, 1
    %s277 = scalar_select %p274, %s275, %s276
    %p280 = pneg %p274
    %p281 = scmp.eq.s32.totalorder %s19, 1
    %p282 = por %p280, %p281
    %p283 = scmp.ne.s32.totalorder %s275, %s278
    %p284 = scmp.eq.s32.totalorder %s19, 0
    %p285 = por %p283, %p284
    %p286 = scmp.ne.s32.totalorder %s275, %s278
    %p287 = scmp.eq.s32.totalorder %s24, 1
    %p288 = por %p286, %p287
    %p289 = scmp.ne.s32.totalorder %s278, %s279
    %p290 = scmp.eq.s32.totalorder %s24, 0
    %p291 = por %p289, %p290
    %p292 = scmp.ne.s32.totalorder %s278, %s279
    %p293 = scmp.eq.s32.totalorder %s25, 1
    %p294 = por %p292, %p293
    %p296 = scmp.ne.s32.totalorder %s279, %s295
    %p297 = scmp.eq.s32.totalorder %s25, 0
    %p298 = por %p296, %p297
    %p299 = scmp.le.s32.totalorder 1, %s19
    %p300 = scmp.lt.s32.totalorder %s19, 3
    %p301 = pnand %p299, %p300
    %p302 = pneg %p301
    // Predicated region
    $region9: #{autoencoder_forward.1} parent=5 // pred_check
      _
    $region10: #{autoencoder_forward.1} parent=5 // pred_check_branch
      %304 = sbr.rel (%p301) target = $region12
    $region11: #{autoencoder_forward.1} parent=5 // pred_region
      %s305 = ssub.s32 %s19, 1
      // Predicated region
      $region13: #{autoencoder_forward.1} parent=11 // pred_check
        %p306 = pneg %p66
      $region14: #{autoencoder_forward.1} parent=11 // pred_check_branch
        %308 = sbr.rel (%p306) target = $region16
      $region15: #{autoencoder_forward.1} parent=11 // pred_region
        _
      $region16: #{autoencoder_forward.1} parent=11 // pred_fallthru
        _
      // Predicated region
      $region17: #{autoencoder_forward.1} parent=11 // pred_check
        %p309 = pneg %p87
      $region18: #{autoencoder_forward.1} parent=11 // pred_check_branch
        %311 = sbr.rel (%p309) target = $region20
      $region19: #{autoencoder_forward.1} parent=11 // pred_region
        _
      $region20: #{autoencoder_forward.1} parent=11 // pred_fallthru
        _
      // Predicated region
      $region21: #{autoencoder_forward.1} parent=11 // pred_check
        %p312 = pneg %p108
      $region22: #{autoencoder_forward.1} parent=11 // pred_check_branch
        %314 = sbr.rel (%p312) target = $region24
      $region23: #{autoencoder_forward.1} parent=11 // pred_region
        _
      $region24: #{autoencoder_forward.1} parent=11 // pred_fallthru
        _
      // Predicated region
      $region25: #{autoencoder_forward.1} parent=11 // pred_check
        %p315 = pneg %p129
      $region26: #{autoencoder_forward.1} parent=11 // pred_check_branch
        %317 = sbr.rel (%p315) target = $region28
      $region27: #{autoencoder_forward.1} parent=11 // pred_region
        _
      $region28: #{autoencoder_forward.1} parent=11 // pred_fallthru
        _
      // Predicated region
      $region29: #{autoencoder_forward.1} parent=11 // pred_check
        %p318 = pneg %p150
      $region30: #{autoencoder_forward.1} parent=11 // pred_check_branch
        %320 = sbr.rel (%p318) target = $region32
      $region31: #{autoencoder_forward.1} parent=11 // pred_region
        _
      $region32: #{autoencoder_forward.1} parent=11 // pred_fallthru
        _
      // Predicated region
      $region33: #{autoencoder_forward.1} parent=11 // pred_check
        %p321 = pneg %p171
      $region34: #{autoencoder_forward.1} parent=11 // pred_check_branch
        %323 = sbr.rel (%p321) target = $region36
      $region35: #{autoencoder_forward.1} parent=11 // pred_region
        _
      $region36: #{autoencoder_forward.1} parent=11 // pred_fallthru
        _
      // Predicated region
      $region37: #{autoencoder_forward.1} parent=11 // pred_check
        %p324 = pneg %p192
      $region38: #{autoencoder_forward.1} parent=11 // pred_check_branch
        %326 = sbr.rel (%p324) target = $region40
      $region39: #{autoencoder_forward.1} parent=11 // pred_region
        _
      $region40: #{autoencoder_forward.1} parent=11 // pred_fallthru
        _
      // Predicated region
      $region41: #{autoencoder_forward.1} parent=11 // pred_check
        %p327 = pneg %p213
      $region42: #{autoencoder_forward.1} parent=11 // pred_check_branch
        %329 = sbr.rel (%p327) target = $region44
      $region43: #{autoencoder_forward.1} parent=11 // pred_region
        _
      $region44: #{autoencoder_forward.1} parent=11 // pred_fallthru
        _
    $region12: #{autoencoder_forward.1} parent=5 // pred_fallthru
      _
    %p330 = scmp.lt.s32.totalorder %s19, 2
    // Predicated region
    $region45: #{autoencoder_forward.1} parent=5 // pred_check
      %p331 = pneg %p330
    $region46: #{autoencoder_forward.1} parent=5 // pred_check_branch
      %333 = sbr.rel (%p331) target = $region48
    $region47: #{autoencoder_forward.1} parent=5 // pred_region
      // Predicated region
      $region49: #{autoencoder_forward.1} parent=47 // pred_check
        %p334 = pneg %p39
      $region50: #{autoencoder_forward.1} parent=47 // pred_check_branch
        %336 = sbr.rel (%p334) target = $region52
      $region51: #{autoencoder_forward.1} parent=47 // pred_region
        %s337 = smul.u32 16, %s19
        %p338 = scmp.lt.s32.totalorder %s337, 31
        %s339 = scalar_select %p338, %s337, 31
        %s340 = smul.addr %s339, 8
        %s341 = scalar_lea.vmem %s0, %s340
        %s342 = smul.u32 16, %s19
      $region52: #{autoencoder_forward.1} parent=47 // pred_fallthru
        _
    $region48: #{autoencoder_forward.1} parent=5 // pred_fallthru
      _
    %p343 = scmp.le.s32.totalorder 1, %s19
    %p344 = scmp.lt.s32.totalorder %s19, 3
    %p345 = pnand %p343, %p344
    %p346 = pneg %p345
    // Predicated region
    $region53: #{autoencoder_forward.1} parent=5 // pred_check
      _
    $region54: #{autoencoder_forward.1} parent=5 // pred_check_branch
      %348 = sbr.rel (%p345) target = $region56
    $region55: #{autoencoder_forward.1} parent=5 // pred_region
      %s349 = ssub.s32 %s19, 1
      %s350 = smul.u32 16, %s24
      %p351 = scmp.lt.s32.totalorder %s350, 31
      %s352 = scalar_select %p351, %s350, 31
      %s353 = smul.addr %s352, 8
      %s354 = scalar_lea.vmem %s0, %s353
      %p355 = pneg %p45
      %p356 = pneg %p42
      %p357 = pneg %p66
      %p358 = pneg %p63
      %p359 = pneg %p87
      %p360 = pneg %p84
      %p361 = pneg %p108
      %p362 = pneg %p105
      %p363 = pneg %p129
      %p364 = pneg %p126
      %p365 = pneg %p150
      %p366 = pneg %p147
      %p367 = pneg %p171
      %p368 = pneg %p168
      %p369 = pneg %p192
      %p370 = pneg %p189
      %p371 = pneg %p213
      %p372 = pneg %p210
      %p373 = pneg %p239
      %p374 = pneg %p236
      %s375 = smul.u32 16, %s24
      %p376 = scmp.lt.s32.totalorder %s375, 31
      %s377 = scalar_select %p376, %s375, 31
      %s378 = smul.addr %s377, 8
      %s379 = scalar_lea.vmem %s9, %s378
      %p380 = pneg %p265
      %p381 = pneg %p262
      %s382 = smul.u32 16, %s24
      %p383 = scmp.lt.s32.totalorder %s382, 31
      %s384 = scalar_select %p383, %s382, 31
      %s385 = smul.addr %s384, 8
      %s386 = scalar_lea.vmem %s10, %s385
      %p387 = pneg %p291
      %p388 = pneg %p288
      %s389 = smul.u32 16, %s24
      %p390 = scmp.lt.s32.totalorder %s389, 31
      %s391 = scalar_select %p390, %s389, 31
      %s392 = smul.addr %s391, 8
      %s393 = scalar_lea.vmem %s11, %s392
      %s394 = smul.u32 16, %s24
      %p395 = scmp.lt.s32.totalorder %s394, 31
      %s396 = scalar_select %p395, %s394, 31
      %s397 = smul.addr %s396, 8
      %s398 = scalar_lea.vmem %s0, %s397
      %s399 = smul.u32 16, %s24
      %s400 = smul.u32 16, %s24
      %p401 = scmp.lt.s32.totalorder %s400, 31
      %s402 = scalar_select %p401, %s400, 31
      %s403 = smul.addr %s402, 8
      %s404 = scalar_lea.vmem %s9, %s403
      %s405 = smul.u32 16, %s24
      %s406 = smul.u32 16, %s24
      %p407 = scmp.lt.s32.totalorder %s406, 31
      %s408 = scalar_select %p407, %s406, 31
      %s409 = smul.addr %s408, 8
      %s410 = scalar_lea.vmem %s10, %s409
      %s411 = smul.u32 16, %s24
      %s412 = smul.u32 16, %s24
      %p413 = scmp.lt.s32.totalorder %s412, 31
      %s414 = scalar_select %p413, %s412, 31
      %s415 = smul.addr %s414, 8
      %s416 = scalar_lea.vmem %s11, %s415
      %s417 = smul.u32 16, %s24
      %v418 = vld [vmem:[%s398] sm:$0xff]
      %v419 = vld [vmem:[%s398 + $0x8] sm:$0xff]
      %v420 = vld [vmem:[%s398 + $0x10] sm:$0xff]
      %v421 = vld [vmem:[%s398 + $0x18] sm:$0xff]
      %v422 = vld [vmem:[%s398 + $0x20] sm:$0xff]
      %v423 = vld [vmem:[%s398 + $0x28] sm:$0xff]
      %v424 = vld [vmem:[%s398 + $0x30] sm:$0xff]
      %v425 = vld [vmem:[%s398 + $0x38] sm:$0xff]
      %v426 = vld [vmem:[%s398 + $0x40] sm:$0xff]
      %v427 = vld [vmem:[%s398 + $0x48] sm:$0xff]
      %v428 = vld [vmem:[%s398 + $0x50] sm:$0xff]
      %v429 = vld [vmem:[%s398 + $0x58] sm:$0xff]
      %v430 = vld [vmem:[%s398 + $0x60] sm:$0xff]
      %v431 = vld [vmem:[%s398 + $0x68] sm:$0xff]
      %v432 = vld [vmem:[%s398 + $0x70] sm:$0xff]
      %v433 = vld [vmem:[%s398 + $0x78] sm:$0xff]
      %v434 = vld [vmem:[%s1] sm:$0xff]
      %v435 = vld [vmem:[%s1 + $0x8] sm:$0xff]
      %v436 = vld [vmem:[%s2] sm:$0x1]
      %v438 = vperm.slane %v436, 0
      %vm440 = vcmask 130048
      %v442 = vsel %vm440, %v418, 0
      %v445 = vsel %vm440, %v419, 0
      %v448 = vsel %vm440, %v420, 0
      %v451 = vsel %vm440, %v421, 0
      %v454 = vsel %vm440, %v422, 0
      %v457 = vsel %vm440, %v423, 0
      %v460 = vsel %vm440, %v424, 0
      %v463 = vsel %vm440, %v425, 0
      %v466 = vsel %vm440, %v426, 0
      %v469 = vsel %vm440, %v427, 0
      %v472 = vsel %vm440, %v428, 0
      %v475 = vsel %vm440, %v429, 0
      %v478 = vsel %vm440, %v430, 0
      %v481 = vsel %vm440, %v431, 0
      %v484 = vsel %vm440, %v432, 0
      %v487 = vsel %vm440, %v433, 0
      %489 = vmatpush.msra.mxu0 0.0
      %490 = vmatpush.msra.mxu0 0.0
      %491 = vmatpush.msra.mxu0 0.0
      %492 = vmatpush.msra.mxu0 0.0
      %493 = vmatpush.msra.mxu0 0.0
      %494 = vmatpush.msra.mxu0 0.0
      %495 = vmatpush.msra.mxu0 0.0
      %496 = vmatpush.msra.mxu0 0.0
      %497 = vmatpush.msra.mxu0 0.0
      %498 = vmatpush.msra.mxu0 0.0
      %499 = vmatpush.msra.mxu0 0.0
      %500 = vmatpush.msra.mxu0 0.0
      %501 = vmatpush.msra.mxu0 0.0
      %502 = vmatpush.msra.mxu0 0.0
      %503 = vmatpush.msra.mxu0 %v435
      %504 = vmatpush.msra.mxu0 %v434
      %505 = vmatmul.f32.gmra.mxu0 %v442
      %v506 = vpop.f32.mrf.mxu0
      %v507 = vadd.f32 %v438, %v506
      %508 = vmatmul.f32.gmra.mxu0 %v445
      %v509 = vpop.f32.mrf.mxu0
      %v510 = vadd.f32 %v438, %v509
      %511 = vmatmul.f32.gmra.mxu0 %v448
      %v512 = vpop.f32.mrf.mxu0
      %v513 = vadd.f32 %v438, %v512
      %514 = vmatmul.f32.gmra.mxu0 %v451
      %v515 = vpop.f32.mrf.mxu0
      %v516 = vadd.f32 %v438, %v515
      %517 = vmatmul.f32.gmra.mxu0 %v454
      %v518 = vpop.f32.mrf.mxu0
      %v519 = vadd.f32 %v438, %v518
      %520 = vmatmul.f32.gmra.mxu0 %v457
      %v521 = vpop.f32.mrf.mxu0
      %v522 = vadd.f32 %v438, %v521
      %523 = vmatmul.f32.gmra.mxu0 %v460
      %v524 = vpop.f32.mrf.mxu0
      %v525 = vadd.f32 %v438, %v524
      %526 = vmatmul.f32.gmra.mxu0 %v463
      %v527 = vpop.f32.mrf.mxu0
      %v528 = vadd.f32 %v438, %v527
      %529 = vmatmul.f32.gmra.mxu0 %v466
      %v530 = vpop.f32.mrf.mxu0
      %v531 = vadd.f32 %v438, %v530
      %532 = vmatmul.f32.gmra.mxu0 %v469
      %v533 = vpop.f32.mrf.mxu0
      %v534 = vadd.f32 %v438, %v533
      %535 = vmatmul.f32.gmra.mxu0 %v472
      %v536 = vpop.f32.mrf.mxu0
      %v537 = vadd.f32 %v438, %v536
      %538 = vmatmul.f32.gmra.mxu0 %v475
      %v539 = vpop.f32.mrf.mxu0
      %v540 = vadd.f32 %v438, %v539
      %541 = vmatmul.f32.gmra.mxu0 %v478
      %v542 = vpop.f32.mrf.mxu0
      %v543 = vadd.f32 %v438, %v542
      %544 = vmatmul.f32.gmra.mxu0 %v481
      %v545 = vpop.f32.mrf.mxu0
      %v546 = vadd.f32 %v438, %v545
      %547 = vmatmul.f32.gmra.mxu0 %v484
      %v548 = vpop.f32.mrf.mxu0
      %v549 = vadd.f32 %v438, %v548
      %550 = vmatmul.f32.gmra.mxu0 %v487
      %v551 = vpop.f32.mrf.mxu0
      %v552 = vadd.f32 %v438, %v551
      %553 = vdwg.mxu0
      %v554 = vtanh.pop %v507
      %v555 = vtanh.pop %v510
      %v556 = vtanh.pop %v513
      %v557 = vtanh.pop %v516
      %v558 = vtanh.pop %v519
      %v559 = vtanh.pop %v522
      %v560 = vtanh.pop %v525
      %v561 = vtanh.pop %v528
      %v562 = vtanh.pop %v531
      %v563 = vtanh.pop %v534
      %v564 = vtanh.pop %v537
      %v565 = vtanh.pop %v540
      %v566 = vtanh.pop %v543
      %v567 = vtanh.pop %v546
      %v568 = vtanh.pop %v549
      %v569 = vtanh.pop %v552
      %vm570 = vcmask 261120
      %571 = vst.msk [vmem:[%s404] sm:$0xff] %vm570, %v554
      %572 = vst.msk [vmem:[%s404 + $0x8] sm:$0xff] %vm570, %v555
      %573 = vst.msk [vmem:[%s404 + $0x10] sm:$0xff] %vm570, %v556
      %574 = vst.msk [vmem:[%s404 + $0x18] sm:$0xff] %vm570, %v557
      %575 = vst.msk [vmem:[%s404 + $0x20] sm:$0xff] %vm570, %v558
      %576 = vst.msk [vmem:[%s404 + $0x28] sm:$0xff] %vm570, %v559
      %577 = vst.msk [vmem:[%s404 + $0x30] sm:$0xff] %vm570, %v560
      %578 = vst.msk [vmem:[%s404 + $0x38] sm:$0xff] %vm570, %v561
      %579 = vst.msk [vmem:[%s404 + $0x40] sm:$0xff] %vm570, %v562
      %580 = vst.msk [vmem:[%s404 + $0x48] sm:$0xff] %vm570, %v563
      %581 = vst.msk [vmem:[%s404 + $0x50] sm:$0xff] %vm570, %v564
      %582 = vst.msk [vmem:[%s404 + $0x58] sm:$0xff] %vm570, %v565
      %583 = vst.msk [vmem:[%s404 + $0x60] sm:$0xff] %vm570, %v566
      %584 = vst.msk [vmem:[%s404 + $0x68] sm:$0xff] %vm570, %v567
      %585 = vst.msk [vmem:[%s404 + $0x70] sm:$0xff] %vm570, %v568
      %586 = vst.msk [vmem:[%s404 + $0x78] sm:$0xff] %vm570, %v569
      %v587 = vld [vmem:[%s3] sm:$0x1]
      %v589 = vperm.slane %v587, 0
      %v591 = vmul.f32 %v554, %v589
      %v592 = vmul.f32 %v555, %v589
      %v593 = vmul.f32 %v556, %v589
      %v594 = vmul.f32 %v557, %v589
      %v595 = vmul.f32 %v558, %v589
      %v596 = vmul.f32 %v559, %v589
      %v597 = vmul.f32 %v560, %v589
      %v598 = vmul.f32 %v561, %v589
      %v599 = vmul.f32 %v562, %v589
      %v600 = vmul.f32 %v563, %v589
      %v601 = vmul.f32 %v564, %v589
      %v602 = vmul.f32 %v565, %v589
      %v603 = vmul.f32 %v566, %v589
      %v604 = vmul.f32 %v567, %v589
      %v605 = vmul.f32 %v568, %v589
      %v606 = vmul.f32 %v569, %v589
      %v607 = vsel %vm570, %v591, 0.0
      %608 = vadd.xlane.f32.xlu0 %v607
      %v609 = vpop.xlane.xlu0 %608
      %v610 = vsel %vm570, %v592, 0.0
      %611 = vadd.xlane.f32.xlu0 %v610
      %v612 = vpop.xlane.xlu0 %611
      %v613 = vsel %vm570, %v593, 0.0
      %614 = vadd.xlane.f32.xlu0 %v613
      %v615 = vpop.xlane.xlu0 %614
      %v616 = vsel %vm570, %v594, 0.0
      %617 = vadd.xlane.f32.xlu0 %v616
      %v618 = vpop.xlane.xlu0 %617
      %v619 = vsel %vm570, %v595, 0.0
      %620 = vadd.xlane.f32.xlu0 %v619
      %v621 = vpop.xlane.xlu0 %620
      %v622 = vsel %vm570, %v596, 0.0
      %623 = vadd.xlane.f32.xlu0 %v622
      %v624 = vpop.xlane.xlu0 %623
      %v625 = vsel %vm570, %v597, 0.0
      %626 = vadd.xlane.f32.xlu0 %v625
      %v627 = vpop.xlane.xlu0 %626
      %v628 = vsel %vm570, %v598, 0.0
      %629 = vadd.xlane.f32.xlu0 %v628
      %v630 = vpop.xlane.xlu0 %629
      %v631 = vsel %vm570, %v599, 0.0
      %632 = vadd.xlane.f32.xlu0 %v631
      %v633 = vpop.xlane.xlu0 %632
      %v634 = vsel %vm570, %v600, 0.0
      %635 = vadd.xlane.f32.xlu0 %v634
      %v636 = vpop.xlane.xlu0 %635
      %v637 = vsel %vm570, %v601, 0.0
      %638 = vadd.xlane.f32.xlu0 %v637
      %v639 = vpop.xlane.xlu0 %638
      %v640 = vsel %vm570, %v602, 0.0
      %641 = vadd.xlane.f32.xlu0 %v640
      %v642 = vpop.xlane.xlu0 %641
      %v643 = vsel %vm570, %v603, 0.0
      %644 = vadd.xlane.f32.xlu0 %v643
      %v645 = vpop.xlane.xlu0 %644
      %v646 = vsel %vm570, %v604, 0.0
      %647 = vadd.xlane.f32.xlu0 %v646
      %v648 = vpop.xlane.xlu0 %647
      %v649 = vsel %vm570, %v605, 0.0
      %650 = vadd.xlane.f32.xlu0 %v649
      %v651 = vpop.xlane.xlu0 %650
      %v652 = vsel %vm570, %v606, 0.0
      %653 = vadd.xlane.f32.xlu0 %v652
      %v654 = vpop.xlane.xlu0 %653
      %s655 = sld [smem:[#allocation2]]
      %v656 = vstv %s655
      %v657 = vadd.f32 %v609, %v656
      %v658 = vadd.f32 %v612, %v656
      %v659 = vadd.f32 %v615, %v656
      %v660 = vadd.f32 %v618, %v656
      %v661 = vadd.f32 %v621, %v656
      %v662 = vadd.f32 %v624, %v656
      %v663 = vadd.f32 %v627, %v656
      %v664 = vadd.f32 %v630, %v656
      %v665 = vadd.f32 %v633, %v656
      %v666 = vadd.f32 %v636, %v656
      %v667 = vadd.f32 %v639, %v656
      %v668 = vadd.f32 %v642, %v656
      %v669 = vadd.f32 %v645, %v656
      %v670 = vadd.f32 %v648, %v656
      %v671 = vadd.f32 %v651, %v656
      %v672 = vadd.f32 %v654, %v656
      %vm673 = vcmask 7168
      %674 = vst.msk [vmem:[%s410] sm:$0xff] %vm673, %v657
      %675 = vst.msk [vmem:[%s410 + $0x8] sm:$0xff] %vm673, %v658
      %676 = vst.msk [vmem:[%s410 + $0x10] sm:$0xff] %vm673, %v659
      %677 = vst.msk [vmem:[%s410 + $0x18] sm:$0xff] %vm673, %v660
      %678 = vst.msk [vmem:[%s410 + $0x20] sm:$0xff] %vm673, %v661
      %679 = vst.msk [vmem:[%s410 + $0x28] sm:$0xff] %vm673, %v662
      %680 = vst.msk [vmem:[%s410 + $0x30] sm:$0xff] %vm673, %v663
      %681 = vst.msk [vmem:[%s410 + $0x38] sm:$0xff] %vm673, %v664
      %682 = vst.msk [vmem:[%s410 + $0x40] sm:$0xff] %vm673, %v665
      %683 = vst.msk [vmem:[%s410 + $0x48] sm:$0xff] %vm673, %v666
      %684 = vst.msk [vmem:[%s410 + $0x50] sm:$0xff] %vm673, %v667
      %685 = vst.msk [vmem:[%s410 + $0x58] sm:$0xff] %vm673, %v668
      %686 = vst.msk [vmem:[%s410 + $0x60] sm:$0xff] %vm673, %v669
      %687 = vst.msk [vmem:[%s410 + $0x68] sm:$0xff] %vm673, %v670
      %688 = vst.msk [vmem:[%s410 + $0x70] sm:$0xff] %vm673, %v671
      %689 = vst.msk [vmem:[%s410 + $0x78] sm:$0xff] %vm673, %v672
      %v690 = vld [vmem:[%s5] sm:$0x1]
      %v692 = vperm.slane %v690, 0
      %v694 = vmul.f32 %v657, %v692
      %v695 = vmul.f32 %v658, %v692
      %v696 = vmul.f32 %v659, %v692
      %v697 = vmul.f32 %v660, %v692
      %v698 = vmul.f32 %v661, %v692
      %v699 = vmul.f32 %v662, %v692
      %v700 = vmul.f32 %v663, %v692
      %v701 = vmul.f32 %v664, %v692
      %v702 = vmul.f32 %v665, %v692
      %v703 = vmul.f32 %v666, %v692
      %v704 = vmul.f32 %v667, %v692
      %v705 = vmul.f32 %v668, %v692
      %v706 = vmul.f32 %v669, %v692
      %v707 = vmul.f32 %v670, %v692
      %v708 = vmul.f32 %v671, %v692
      %v709 = vmul.f32 %v672, %v692
      %v710 = vld [vmem:[%s6] sm:$0x1]
      %v712 = vperm.slane %v710, 0
      %v714 = vadd.f32 %v694, %v712
      %v715 = vadd.f32 %v695, %v712
      %v716 = vadd.f32 %v696, %v712
      %v717 = vadd.f32 %v697, %v712
      %v718 = vadd.f32 %v698, %v712
      %v719 = vadd.f32 %v699, %v712
      %v720 = vadd.f32 %v700, %v712
      %v721 = vadd.f32 %v701, %v712
      %v722 = vadd.f32 %v702, %v712
      %v723 = vadd.f32 %v703, %v712
      %v724 = vadd.f32 %v704, %v712
      %v725 = vadd.f32 %v705, %v712
      %v726 = vadd.f32 %v706, %v712
      %v727 = vadd.f32 %v707, %v712
      %v728 = vadd.f32 %v708, %v712
      %v729 = vadd.f32 %v709, %v712
      %v730 = vtanh.pop %v714
      %v731 = vtanh.pop %v715
      %v732 = vtanh.pop %v716
      %v733 = vtanh.pop %v717
      %v734 = vtanh.pop %v718
      %v735 = vtanh.pop %v719
      %v736 = vtanh.pop %v720
      %v737 = vtanh.pop %v721
      %v738 = vtanh.pop %v722
      %v739 = vtanh.pop %v723
      %v740 = vtanh.pop %v724
      %v741 = vtanh.pop %v725
      %v742 = vtanh.pop %v726
      %v743 = vtanh.pop %v727
      %v744 = vtanh.pop %v728
      %v745 = vtanh.pop %v729
      %v746 = vld [vmem:[%s7] sm:$0xff]
      %v747 = vld [vmem:[%s7 + $0x8] sm:$0xff]
      %v748 = vld [vmem:[%s7 + $0x10] sm:$0xff]
      %v749 = vld [vmem:[%s7 + $0x18] sm:$0xff]
      %v750 = vld [vmem:[%s8] sm:$0x1]
      %v752 = vperm.slane %v750, 0
      %v755 = vsel %vm570, %v730, 0
      %v758 = vsel %vm570, %v731, 0
      %v761 = vsel %vm570, %v732, 0
      %v764 = vsel %vm570, %v733, 0
      %v767 = vsel %vm570, %v734, 0
      %v770 = vsel %vm570, %v735, 0
      %v773 = vsel %vm570, %v736, 0
      %v776 = vsel %vm570, %v737, 0
      %v779 = vsel %vm570, %v738, 0
      %v782 = vsel %vm570, %v739, 0
      %v785 = vsel %vm570, %v740, 0
      %v788 = vsel %vm570, %v741, 0
      %v791 = vsel %vm570, %v742, 0
      %v794 = vsel %vm570, %v743, 0
      %v797 = vsel %vm570, %v744, 0
      %v800 = vsel %vm570, %v745, 0
      %802 = vmatpush.msra.mxu0 0.0
      %803 = vmatpush.msra.mxu0 0.0
      %804 = vmatpush.msra.mxu0 0.0
      %805 = vmatpush.msra.mxu0 0.0
      %806 = vmatpush.msra.mxu0 0.0
      %807 = vmatpush.msra.mxu0 0.0
      %808 = vmatpush.msra.mxu0 0.0
      %809 = vmatpush.msra.mxu0 0.0
      %810 = vmatpush.msra.mxu0 0.0
      %811 = vmatpush.msra.mxu0 0.0
      %812 = vmatpush.msra.mxu0 0.0
      %813 = vmatpush.msra.mxu0 0.0
      %814 = vmatpush.msra.mxu0 %v749
      %815 = vmatpush.msra.mxu0 %v748
      %816 = vmatpush.msra.mxu0 %v747
      %817 = vmatpush.msra.mxu0 %v746
      %818 = vmatmul.f32.gmra.mxu0 %v755
      %v819 = vpop.f32.mrf.mxu0
      %v820 = vadd.f32 %v752, %v819
      %821 = vmatmul.f32.gmra.mxu0 %v758
      %v822 = vpop.f32.mrf.mxu0
      %v823 = vadd.f32 %v752, %v822
      %824 = vmatmul.f32.gmra.mxu0 %v761
      %v825 = vpop.f32.mrf.mxu0
      %v826 = vadd.f32 %v752, %v825
      %827 = vmatmul.f32.gmra.mxu0 %v764
      %v828 = vpop.f32.mrf.mxu0
      %v829 = vadd.f32 %v752, %v828
      %830 = vmatmul.f32.gmra.mxu0 %v767
      %v831 = vpop.f32.mrf.mxu0
      %v832 = vadd.f32 %v752, %v831
      %833 = vmatmul.f32.gmra.mxu0 %v770
      %v834 = vpop.f32.mrf.mxu0
      %v835 = vadd.f32 %v752, %v834
      %836 = vmatmul.f32.gmra.mxu0 %v773
      %v837 = vpop.f32.mrf.mxu0
      %v838 = vadd.f32 %v752, %v837
      %839 = vmatmul.f32.gmra.mxu0 %v776
      %v840 = vpop.f32.mrf.mxu0
      %v841 = vadd.f32 %v752, %v840
      %842 = vmatmul.f32.gmra.mxu0 %v779
      %v843 = vpop.f32.mrf.mxu0
      %v844 = vadd.f32 %v752, %v843
      %845 = vmatmul.f32.gmra.mxu0 %v782
      %v846 = vpop.f32.mrf.mxu0
      %v847 = vadd.f32 %v752, %v846
      %848 = vmatmul.f32.gmra.mxu0 %v785
      %v849 = vpop.f32.mrf.mxu0
      %v850 = vadd.f32 %v752, %v849
      %851 = vmatmul.f32.gmra.mxu0 %v788
      %v852 = vpop.f32.mrf.mxu0
      %v853 = vadd.f32 %v752, %v852
      %854 = vmatmul.f32.gmra.mxu0 %v791
      %v855 = vpop.f32.mrf.mxu0
      %v856 = vadd.f32 %v752, %v855
      %857 = vmatmul.f32.gmra.mxu0 %v794
      %v858 = vpop.f32.mrf.mxu0
      %v859 = vadd.f32 %v752, %v858
      %860 = vmatmul.f32.gmra.mxu0 %v797
      %v861 = vpop.f32.mrf.mxu0
      %v862 = vadd.f32 %v752, %v861
      %863 = vmatmul.f32.gmra.mxu0 %v800
      %v864 = vpop.f32.mrf.mxu0
      %v865 = vadd.f32 %v752, %v864
      %866 = vdwg.mxu0
      %867 = vst.msk [vmem:[%s416] sm:$0xff] %vm440, %v820
      %868 = vst.msk [vmem:[%s416 + $0x8] sm:$0xff] %vm440, %v823
      %869 = vst.msk [vmem:[%s416 + $0x10] sm:$0xff] %vm440, %v826
      %870 = vst.msk [vmem:[%s416 + $0x18] sm:$0xff] %vm440, %v829
      %871 = vst.msk [vmem:[%s416 + $0x20] sm:$0xff] %vm440, %v832
      %872 = vst.msk [vmem:[%s416 + $0x28] sm:$0xff] %vm440, %v835
      %873 = vst.msk [vmem:[%s416 + $0x30] sm:$0xff] %vm440, %v838
      %874 = vst.msk [vmem:[%s416 + $0x38] sm:$0xff] %vm440, %v841
      %875 = vst.msk [vmem:[%s416 + $0x40] sm:$0xff] %vm440, %v844
      %876 = vst.msk [vmem:[%s416 + $0x48] sm:$0xff] %vm440, %v847
      %877 = vst.msk [vmem:[%s416 + $0x50] sm:$0xff] %vm440, %v850
      %878 = vst.msk [vmem:[%s416 + $0x58] sm:$0xff] %vm440, %v853
      %879 = vst.msk [vmem:[%s416 + $0x60] sm:$0xff] %vm440, %v856
      %880 = vst.msk [vmem:[%s416 + $0x68] sm:$0xff] %vm440, %v859
      %881 = vst.msk [vmem:[%s416 + $0x70] sm:$0xff] %vm440, %v862
      %882 = vst.msk [vmem:[%s416 + $0x78] sm:$0xff] %vm440, %v865
      %s883 = smul.u32 16, %s24
      %p884 = scmp.lt.s32.totalorder %s883, 31
      %s885 = scalar_select %p884, %s883, 31
      %s886 = smul.addr %s885, 8
      %s887 = scalar_lea.vmem %s9, %s886
      %s888 = smul.u32 16, %s24
      %p889 = scmp.lt.s32.totalorder %s888, 31
      %s890 = scalar_select %p889, %s888, 31
      %s891 = smul.addr %s890, 8
      %s892 = scalar_lea.vmem %s10, %s891
      %s893 = smul.u32 16, %s24
      %p894 = scmp.lt.s32.totalorder %s893, 31
      %s895 = scalar_select %p894, %s893, 31
      %s896 = smul.addr %s895, 8
      %s897 = scalar_lea.vmem %s11, %s896
      // Predicated region
      $region57: #{autoencoder_forward.1} parent=55 // pred_check
        %p898 = pneg %p236
      $region58: #{autoencoder_forward.1} parent=55 // pred_check_branch
        %900 = sbr.rel (%p898) target = $region60
      $region59: #{autoencoder_forward.1} parent=55 // pred_region
        %s901 = smul.u32 16, %s24
      $region60: #{autoencoder_forward.1} parent=55 // pred_fallthru
        _
      // Predicated region
      $region61: #{autoencoder_forward.1} parent=55 // pred_check
        %p902 = pneg %p262
      $region62: #{autoencoder_forward.1} parent=55 // pred_check_branch
        %904 = sbr.rel (%p902) target = $region64
      $region63: #{autoencoder_forward.1} parent=55 // pred_region
        %s905 = smul.u32 16, %s24
      $region64: #{autoencoder_forward.1} parent=55 // pred_fallthru
        _
      // Predicated region
      $region65: #{autoencoder_forward.1} parent=55 // pred_check
        %p906 = pneg %p288
      $region66: #{autoencoder_forward.1} parent=55 // pred_check_branch
        %908 = sbr.rel (%p906) target = $region68
      $region67: #{autoencoder_forward.1} parent=55 // pred_region
        %s909 = smul.u32 16, %s24
      $region68: #{autoencoder_forward.1} parent=55 // pred_fallthru
        _
    $region56: #{autoencoder_forward.1} parent=5 // pred_fallthru
      _
    %p910 = scmp.le.s32.totalorder 2, %s19
    // Predicated region
    $region69: #{autoencoder_forward.1} parent=5 // pred_check
      %p911 = pneg %p910
    $region70: #{autoencoder_forward.1} parent=5 // pred_check_branch
      %913 = sbr.rel (%p911) target = $region72
    $region71: #{autoencoder_forward.1} parent=5 // pred_region
      %s914 = ssub.s32 %s19, 2
      // Predicated region
      $region73: #{autoencoder_forward.1} parent=71 // pred_check
        %p915 = pneg %p242
      $region74: #{autoencoder_forward.1} parent=71 // pred_check_branch
        %917 = sbr.rel (%p915) target = $region76
      $region75: #{autoencoder_forward.1} parent=71 // pred_region
        %s918 = smul.u32 16, %s25
        %p919 = scmp.lt.s32.totalorder %s918, 31
        %s920 = scalar_select %p919, %s918, 31
        %s921 = smul.addr %s920, 8
        %s922 = scalar_lea.vmem %s9, %s921
      $region76: #{autoencoder_forward.1} parent=71 // pred_fallthru
        _
      // Predicated region
      $region77: #{autoencoder_forward.1} parent=71 // pred_check
        %p923 = pneg %p268
      $region78: #{autoencoder_forward.1} parent=71 // pred_check_branch
        %925 = sbr.rel (%p923) target = $region80
      $region79: #{autoencoder_forward.1} parent=71 // pred_region
        %s926 = smul.u32 16, %s25
        %p927 = scmp.lt.s32.totalorder %s926, 31
        %s928 = scalar_select %p927, %s926, 31
        %s929 = smul.addr %s928, 8
        %s930 = scalar_lea.vmem %s10, %s929
      $region80: #{autoencoder_forward.1} parent=71 // pred_fallthru
        _
      // Predicated region
      $region81: #{autoencoder_forward.1} parent=71 // pred_check
        %p931 = pneg %p294
      $region82: #{autoencoder_forward.1} parent=71 // pred_check_branch
        %933 = sbr.rel (%p931) target = $region84
      $region83: #{autoencoder_forward.1} parent=71 // pred_region
        %s934 = smul.u32 16, %s25
        %p935 = scmp.lt.s32.totalorder %s934, 31
        %s936 = scalar_select %p935, %s934, 31
        %s937 = smul.addr %s936, 8
        %s938 = scalar_lea.vmem %s11, %s937
      $region84: #{autoencoder_forward.1} parent=71 // pred_fallthru
        _
    $region72: #{autoencoder_forward.1} parent=5 // pred_fallthru
      _
  $region6: #{autoencoder_forward.1} parent=0 // loop_footer
    %s23 = sadd.s32 1, %s19
  $region7: #{autoencoder_forward.1} parent=0 // loop_footer_branch
    %18 = sbr.rel target = $region3
  $region8: #{autoencoder_forward.1} parent=0 // loop_exit
    _

</llo_original>
